<compile_context>
chip_gen: v5e
topology: v5e:2x2
jax: 0.10.0
libtpu: 0.0.40
codegen_flags: <defaults>
</compile_context>

<pallas_src>
import jax
import jax.numpy as jnp
from jax.experimental import pallas as pl
from jax.experimental.pallas import tpu as pltpu

EPS = 1e-6


def _dice_loss_kernel(pred_ref, true_ref, tsq_ref, out_ref):
    """One grid step = one (spatial tile s, batch element b) pair.

    pred_ref : (1, C, St, 128) lane-dense logits for batch b, spatial tile s
    true_ref : (C, St, 128)    y_true tile (block index constant across the inner
                               batch axis -> stays resident, no re-DMA per b)
    tsq_ref  : (St, 128)       precomputed sum_c(y_true^2) for this tile
    out_ref  : (1, 1, 1, 1)    partial sum of per-pixel dice for this (s, b) block
    """
    p = jax.nn.sigmoid(pred_ref[0].astype(jnp.float32))      # (C, St, 128)  EUP
    t = true_ref[...].astype(jnp.float32)                    # (C, St, 128)

    # Leading-axis (C) reductions lower to VPU adds across vreg planes (no XLU).
    inter = jnp.sum(p * t, axis=0)                           # (St, 128)
    psq = jnp.sum(p * p, axis=0)                             # (St, 128)

    denom = psq + tsq_ref[...] + EPS                         # (St, 128)
    dice = (2.0 * inter + EPS) * pl.reciprocal(denom, approx=True)

    # Single full reduce per block (amortized over the whole tile).
    out_ref[...] = jnp.sum(dice).reshape(1, 1, 1, 1)


def dice_loss(y_pred, y_true, *, vmem_limit_bytes=32 * 1024 * 1024,
              tile_budget_bytes=2 * 1024 * 1024):
    B, C, H, W = y_pred.shape
    assert y_true.shape == (B, H, W)
    # torch's broadcast (unsqueeze(1)) lines up y_true's batch dim with C:
    assert y_true.shape[0] == C, "module's broadcasting requires B == C"

    S = H * W
    # TODO(synk): pad the flattened spatial axis when H*W is not a multiple of 128.
    assert S % 128 == 0, "lane-dense path requires H*W % 128 == 0"
    s_rows = S // 128

    # Lane-dense views: last dim = 128 lanes, second-last = sublanes, C leading.
    pred = y_pred.reshape(B, C, s_rows, 128)
    true_r = y_true.reshape(C, s_rows, 128)
    # Hoisted y_true work: identical for every batch element, compute once.
    tsq = jnp.sum(true_r.astype(jnp.float32) ** 2, axis=0)   # (s_rows, 128)

    # Spatial tile: largest valid divisor of s_rows (multiple of 8, or the full
    # extent) whose pred block stays under the per-buffer budget, so 2x-buffered
    # inputs fit VMEM on every generation (v5e 16 MiB scoped ... v7x 64 MiB).
    itemsize = jnp.dtype(y_pred.dtype).itemsize
    divisors = [d for d in range(1, s_rows + 1)
                if s_rows % d == 0 and (d % 8 == 0 or d == s_rows)]
    fitting = [d for d in divisors if C * d * 128 * itemsize <= tile_budget_bytes]
    s_tile = max(fitting) if fitting else min(divisors)
    num_tiles = s_rows // s_tile

    partials = pl.pallas_call(
        _dice_loss_kernel,
        out_shape=jax.ShapeDtypeStruct((num_tiles, B, 1, 1), jnp.float32),
        grid_spec=pltpu.PrefetchScalarGridSpec(
            num_scalar_prefetch=0,
            # B is the innermost axis so the y_true / tsq block indices are
            # constant across it -> each y_true tile is DMA'd once, not B times.
            grid=(num_tiles, B),
            in_specs=[
                pl.BlockSpec((1, C, s_tile, 128), lambda s, b: (b, 0, s, 0)),
                pl.BlockSpec((C, s_tile, 128), lambda s, b: (0, s, 0)),
                pl.BlockSpec((s_tile, 128), lambda s, b: (s, 0)),
            ],
            out_specs=pl.BlockSpec((1, 1, 1, 1), lambda s, b: (s, b, 0, 0)),
        ),
        compiler_params=pltpu.CompilerParams(
            # Every output block is independent -> both axes parallel
            # (shards the grid across both TensorCores on v7x).
            dimension_semantics=("parallel", "parallel"),
            vmem_limit_bytes=vmem_limit_bytes,
        ),
    )(pred, true_r, tsq)

    # Finish the mean in plain JAX (divisor uses the FULL spatial extent).
    return 1.0 - jnp.sum(partials) / jnp.float32(B * S)


def dice_loss_ref(y_pred, y_true):
    """Plain-JAX mirror of the exact torch broadcasting, for verification."""
    p = jax.nn.sigmoid(y_pred.astype(jnp.float32))[:, None]   # (B, 1, C, H, W)
    t = y_true.astype(jnp.float32)
    inter = jnp.sum(p * t, axis=(1, 2))                       # (B, H, W)
    denom = jnp.sum(p ** 2 + t ** 2, axis=(1, 2))             # (B, H, W)
    dice = (2.0 * inter + EPS) / (denom + EPS)
    return 1.0 - dice.mean()


if __name__ == "__main__":
    key = jax.random.PRNGKey(0)
    k1, k2 = jax.random.split(key)

    B = C = 4          # module's broadcast requires B == C
    H = W = 16

    # bf16 logits: halves HBM traffic for the dominant input; math stays f32 in-kernel.
    y_pred = jax.random.normal(k1, (B, C, H, W), dtype=jnp.float32).astype(jnp.bfloat16)
    y_true = (jax.random.uniform(k2, (B, H, W)) > 0.5).astype(jnp.float32)

    loss = dice_loss(y_pred, y_true)
    jax.block_until_ready(loss)

    ref = dice_loss_ref(y_pred, y_true)
    # tolerance loosened for the approximate EUP reciprocal (~2^-12 relative)
    assert jnp.allclose(loss, ref, atol=2e-3, rtol=2e-3), (loss, ref)

    print("KERNEL_OK")
</pallas_src>

<mosaic_0001>
module attributes {stable_mosaic.version = 11 : i64} {
  func.func @_dice_loss_kernel(%arg0: i32, %arg1: i32, %arg2: memref<1x4x2x128xbf16, #tpu.memory_space<vmem>>, %arg3: memref<4x2x128xf32, #tpu.memory_space<vmem>>, %arg4: memref<2x128xf32, #tpu.memory_space<vmem>>, %arg5: memref<1x1x1x1xf32, #tpu.memory_space<vmem>>) attributes {dimension_semantics = [#tpu.dimension_semantics<parallel>, #tpu.dimension_semantics<parallel>], iteration_bounds = array<i64: 1, 4>, scalar_prefetch = 0 : i64, scratch_operands = 0 : i64, tpu.core_type = #tpu.core_type<tc>, window_params = [{transform_indices = @transform_0, window_bounds = array<i64: 1, 4, 2, 128>}, {transform_indices = @transform_1, window_bounds = array<i64: 4, 2, 128>}, {transform_indices = @transform_2, window_bounds = array<i64: 2, 128>}, {transform_indices = @transform_3, window_bounds = array<i64: 1, 1, 1, 1>}]} {
    %c0 = arith.constant 0 : index
    %c0_0 = arith.constant 0 : index
    %c0_1 = arith.constant 0 : index
    %c0_2 = arith.constant 0 : index
    %0 = vector.load %arg2[%c0, %c0_0, %c0_1, %c0_2] : memref<1x4x2x128xbf16, #tpu.memory_space<vmem>>, vector<1x4x2x128xbf16>
    %1 = vector.shape_cast %0 : vector<1x4x2x128xbf16> to vector<4x2x128xbf16>
    %2 = arith.extf %1 : vector<4x2x128xbf16> to vector<4x2x128xf32>
    %3 = arith.negf %2 : vector<4x2x128xf32>
    %4 = math.exp %3 : vector<4x2x128xf32>
    %cst = arith.constant 1.000000e+00 : f32
    %5 = vector.broadcast %cst : f32 to vector<4x2x128xf32>
    %6 = arith.addf %5, %4 : vector<4x2x128xf32>
    %7 = arith.divf %5, %6 : vector<4x2x128xf32>
    %c0_3 = arith.constant 0 : index
    %c0_4 = arith.constant 0 : index
    %c0_5 = arith.constant 0 : index
    %8 = vector.load %arg3[%c0_3, %c0_4, %c0_5] : memref<4x2x128xf32, #tpu.memory_space<vmem>>, vector<4x2x128xf32>
    %9 = arith.mulf %7, %8 : vector<4x2x128xf32>
    %cst_6 = arith.constant dense<0.000000e+00> : vector<2x128xf32>
    %10 = vector.multi_reduction <add>, %9, %cst_6 [0] : vector<4x2x128xf32> to vector<2x128xf32>
    %11 = arith.mulf %7, %7 : vector<4x2x128xf32>
    %cst_7 = arith.constant dense<0.000000e+00> : vector<2x128xf32>
    %12 = vector.multi_reduction <add>, %11, %cst_7 [0] : vector<4x2x128xf32> to vector<2x128xf32>
    %c0_8 = arith.constant 0 : index
    %c0_9 = arith.constant 0 : index
    %13 = vector.load %arg4[%c0_8, %c0_9] : memref<2x128xf32, #tpu.memory_space<vmem>>, vector<2x128xf32>
    %14 = arith.addf %12, %13 : vector<2x128xf32>
    %cst_10 = arith.constant 9.99999997E-7 : f32
    %15 = vector.broadcast %cst_10 : f32 to vector<2x128xf32>
    %16 = arith.addf %14, %15 : vector<2x128xf32>
    %cst_11 = arith.constant 2.000000e+00 : f32
    %17 = vector.broadcast %cst_11 : f32 to vector<2x128xf32>
    %18 = arith.mulf %17, %10 : vector<2x128xf32>
    %cst_12 = arith.constant 9.99999997E-7 : f32
    %19 = vector.broadcast %cst_12 : f32 to vector<2x128xf32>
    %20 = arith.addf %18, %19 : vector<2x128xf32>
    %21 = tpu.reciprocal %16 {approx = true} : vector<2x128xf32> -> vector<2x128xf32>
    %22 = arith.mulf %20, %21 : vector<2x128xf32>
    %23 = vector.shape_cast %22 : vector<2x128xf32> to vector<1x2x128xf32>
    %cst_13 = arith.constant dense<0.000000e+00> : vector<1xf32>
    %24 = vector.multi_reduction <add>, %23, %cst_13 [1, 2] : vector<1x2x128xf32> to vector<1xf32>
    %25 = vector.shape_cast %24 : vector<1xf32> to vector<1x1x1xf32>
    %26 = vector.extract %25[0, 0, 0] : f32 from vector<1x1x1xf32>
    %27 = vector.broadcast %26 : f32 to vector<1x1x1x1xf32>
    %c0_14 = arith.constant 0 : index
    %c0_15 = arith.constant 0 : index
    %c0_16 = arith.constant 0 : index
    %c0_17 = arith.constant 0 : index
    %28 = vector.load %arg5[%c0_14, %c0_15, %c0_16, %c0_17] : memref<1x1x1x1xf32, #tpu.memory_space<vmem>>, vector<1x1x1x1xf32>
    tpu.vector_store %arg5[%c0_14, %c0_15, %c0_16, %c0_17], %27 {strides = array<i32>} : memref<1x1x1x1xf32, #tpu.memory_space<vmem>>, vector<1x1x1x1xf32>,
    return
  }
  func.func @transform_0(%arg0: i32, %arg1: i32) -> (i32, i32, i32, i32) {
    %c0_i32 = arith.constant 0 : i32
    %c0_i32_0 = arith.constant 0 : i32
    %c0_i32_1 = arith.constant 0 : i32
    return %arg1, %c0_i32, %arg0, %c0_i32_0 : i32, i32, i32, i32
  }
  func.func @transform_1(%arg0: i32, %arg1: i32) -> (i32, i32, i32) {
    %c0_i32 = arith.constant 0 : i32
    %c0_i32_0 = arith.constant 0 : i32
    %c0_i32_1 = arith.constant 0 : i32
    return %c0_i32, %arg0, %c0_i32_0 : i32, i32, i32
  }
  func.func @transform_2(%arg0: i32, %arg1: i32) -> (i32, i32) {
    %c0_i32 = arith.constant 0 : i32
    %c0_i32_0 = arith.constant 0 : i32
    return %arg0, %c0_i32 : i32, i32
  }
  func.func @transform_3(%arg0: i32, %arg1: i32) -> (i32, i32, i32, i32) {
    %c0_i32 = arith.constant 0 : i32
    %c0_i32_0 = arith.constant 0 : i32
    %c0_i32_1 = arith.constant 0 : i32
    return %arg0, %arg1, %c0_i32, %c0_i32_0 : i32, i32, i32, i32
  }
}

</mosaic_0001>

<llo_original>
// kernel: tpu_custom_call.1
$region0: #{tpu_custom_call.1}
  #allocation0 [shape = 'u32[]', space=smem, size = 0x4, offset = 0x4, fixed_abs, tag = 'smem constant byte address 0x4 - core index']
  #allocation1 [shape = 'u32[72,128]{1,0:T(1,128)}', space=vmem, size = 0x9000, scoped, tag = 'internal scratch']
  %s0 = inlined_call_operand.hbm [shape: bf16[4,4,2,128], index: 0, kind: input, shape index: {}]
  %s1 = inlined_call_operand.hbm [shape: f32[4,2,128], index: 1, kind: input, shape index: {}]
  %s2 = inlined_call_operand.hbm [shape: f32[2,128], index: 2, kind: input, shape index: {}]
  %s3 = inlined_call_operand.vmem [shape: f32[1,4,1,1], index: 3, kind: output, shape index: {}]
  %s4 = sld [smem:[#allocation0]]
  $region57: #{tpu_custom_call.1} parent=0
    _
  %s6 = ssub.s32 1, %s4
  %s7 = scalar_select 0, %s6, %s4
  $region1: #{tpu_custom_call.1} parent=0
    #allocation2 [shape = 'u8[4096]{0}', space=vmem, size = 0x1000, scoped, tag = 'input window, operand 0']
    #allocation3 [shape = 's32[2]{0}', space=sflag, size = 0x8, scoped, tag = 'scoped memory for tpu_custom_call.1']
    #allocation4 [shape = 'u8[4096]{0}', space=vmem, size = 0x1000, scoped, tag = 'input window, operand 1, single buffered']
    #allocation5 [shape = 's32[1]{0}', space=sflag, size = 0x4, scoped, tag = 'scoped memory for tpu_custom_call.1']
    #allocation6 [shape = 'u8[1024]{0}', space=vmem, size = 0x400, scoped, tag = 'input window, operand 2, single buffered']
    %8 = vsyncpa [#allocation3], 0
    %s9 = scalar_lea.sflag [#allocation3], 1
    %10 = vsyncpa %s9, 0
    %11 = vsyncpa [#allocation5], 0
    loop: start=0, step=1, limit=6
    $region2: #{tpu_custom_call.1} parent=1 // loop_pre_header
      _
    $region3: #{tpu_custom_call.1} parent=1 // loop_header
      %s13 = sphi 0, %s17
      %p14 = scmp.ge.s32.totalorder %s13, 6
      %s20 = sphi 0, %s32
      %s21 = sphi 0, %s28
      %s22 = sphi 0, %s20
      %s23 = sphi 0, %s21
      %s24 = sphi 0, %s22
      %s25 = sphi 0, %s23
      %s37 = sphi 0, %s39
      %s40 = sphi 0, %s37
      %s41 = sphi 0, %s40
      %s57 = sphi 0, %s41
      %s63 = sphi 0, %s65
      %s66 = sphi 0, %s63
      %s67 = sphi 0, %s66
      %s83 = sphi 0, %s67
      %s89 = sphi 0, %s91
      %s92 = sphi 0, %s89
      %s93 = sphi 0, %s92
      %s109 = sphi 0, %s93
      %s117 = sphi 0, %s119
      %s120 = sphi 0, %s117
      %s121 = sphi 0, %s120
      %s137 = sphi 0, %s121
    $region4: #{tpu_custom_call.1} parent=1 // loop_header_branch
      %16 = sbr.rel (%p14) target = $region8
    $region5: #{tpu_custom_call.1} parent=1 // loop_body
      %s18 = ssub.s32 %s13, 1
      %s19 = ssub.s32 %s13, 2
      %s26 = sadd.s32 1, %s21
      %p27 = scmp.ge.s32.totalorder %s26, 4
      %s28 = scalar_select %p27, 0, %s26
      %s29 = sadd.s32 1, %s20
      %s30 = scalar_select %p27, %s29, %s20
      %p31 = scmp.ge.s32.totalorder %s30, 1
      %s32 = scalar_select %p31, 0, %s30
      %s33 = ssub.s32 %s21, %s28
      %s34 = ssub.s32 %s20, %s32
      %s35 = sor.u32 %s33, %s34
      %p36 = scmp.eq.s32.totalorder %s35, 0
      %s38 = sadd.s32 %s37, 1
      %s39 = scalar_select %p36, %s37, %s38
      %p42 = pneg %p36
      %p43 = scmp.eq.s32.totalorder %s13, 3
      %p44 = por %p42, %p43
      %p45 = scmp.ne.s32.totalorder %s37, %s40
      %p46 = scmp.eq.s32.totalorder %s13, 0
      %p47 = por %p45, %p46
      %p48 = scmp.ne.s32.totalorder %s37, %s40
      %p49 = scmp.eq.s32.totalorder %s18, 3
      %p50 = por %p48, %p49
      %p51 = scmp.ne.s32.totalorder %s40, %s41
      %p52 = scmp.eq.s32.totalorder %s18, 0
      %p53 = por %p51, %p52
      %p54 = scmp.ne.s32.totalorder %s40, %s41
      %p55 = scmp.eq.s32.totalorder %s19, 3
      %p56 = por %p54, %p55
      %p58 = scmp.ne.s32.totalorder %s41, %s57
      %p59 = scmp.eq.s32.totalorder %s19, 0
      %p60 = por %p58, %p59
      %s61 = ssub.s32 %s20, %s32
      %p62 = scmp.eq.s32.totalorder %s61, 0
      %s64 = sadd.s32 %s63, 1
      %s65 = scalar_select %p62, %s63, %s64
      %p68 = pneg %p62
      %p69 = scmp.eq.s32.totalorder %s13, 3
      %p70 = por %p68, %p69
      %p71 = scmp.ne.s32.totalorder %s63, %s66
      %p72 = scmp.eq.s32.totalorder %s13, 0
      %p73 = por %p71, %p72
      %p74 = scmp.ne.s32.totalorder %s63, %s66
      %p75 = scmp.eq.s32.totalorder %s18, 3
      %p76 = por %p74, %p75
      %p77 = scmp.ne.s32.totalorder %s66, %s67
      %p78 = scmp.eq.s32.totalorder %s18, 0
      %p79 = por %p77, %p78
      %p80 = scmp.ne.s32.totalorder %s66, %s67
      %p81 = scmp.eq.s32.totalorder %s19, 3
      %p82 = por %p80, %p81
      %p84 = scmp.ne.s32.totalorder %s67, %s83
      %p85 = scmp.eq.s32.totalorder %s19, 0
      %p86 = por %p84, %p85
      %s87 = ssub.s32 %s20, %s32
      %p88 = scmp.eq.s32.totalorder %s87, 0
      %s90 = sadd.s32 %s89, 1
      %s91 = scalar_select %p88, %s89, %s90
      %p94 = pneg %p88
      %p95 = scmp.eq.s32.totalorder %s13, 3
      %p96 = por %p94, %p95
      %p97 = scmp.ne.s32.totalorder %s89, %s92
      %p98 = scmp.eq.s32.totalorder %s13, 0
      %p99 = por %p97, %p98
      %p100 = scmp.ne.s32.totalorder %s89, %s92
      %p101 = scmp.eq.s32.totalorder %s18, 3
      %p102 = por %p100, %p101
      %p103 = scmp.ne.s32.totalorder %s92, %s93
      %p104 = scmp.eq.s32.totalorder %s18, 0
      %p105 = por %p103, %p104
      %p106 = scmp.ne.s32.totalorder %s92, %s93
      %p107 = scmp.eq.s32.totalorder %s19, 3
      %p108 = por %p106, %p107
      %p110 = scmp.ne.s32.totalorder %s93, %s109
      %p111 = scmp.eq.s32.totalorder %s19, 0
      %p112 = por %p110, %p111
      %s113 = ssub.s32 %s20, %s32
      %s114 = ssub.s32 %s21, %s28
      %s115 = sor.u32 %s113, %s114
      %p116 = scmp.eq.s32.totalorder %s115, 0
      %s118 = sadd.s32 %s117, 1
      %s119 = scalar_select %p116, %s117, %s118
      %p122 = pneg %p116
      %p123 = scmp.eq.s32.totalorder %s13, 3
      %p124 = por %p122, %p123
      %p125 = scmp.ne.s32.totalorder %s117, %s120
      %p126 = scmp.eq.s32.totalorder %s13, 0
      %p127 = por %p125, %p126
      %p128 = scmp.ne.s32.totalorder %s117, %s120
      %p129 = scmp.eq.s32.totalorder %s18, 3
      %p130 = por %p128, %p129
      %p131 = scmp.ne.s32.totalorder %s120, %s121
      %p132 = scmp.eq.s32.totalorder %s18, 0
      %p133 = por %p131, %p132
      %p134 = scmp.ne.s32.totalorder %s120, %s121
      %p135 = scmp.eq.s32.totalorder %s19, 3
      %p136 = por %p134, %p135
      %p138 = scmp.ne.s32.totalorder %s121, %s137
      %p139 = scmp.eq.s32.totalorder %s19, 0
      %p140 = por %p138, %p139
      %p141 = scmp.le.s32.totalorder 1, %s13
      %p142 = scmp.lt.s32.totalorder %s13, 5
      %p143 = pnand %p141, %p142
      %p144 = pneg %p143
      // Predicated region
      $region9: #{tpu_custom_call.1} parent=5 // pred_check
        _
      $region10: #{tpu_custom_call.1} parent=5 // pred_check_branch
        %146 = sbr.rel (%p143) target = $region12
      $region11: #{tpu_custom_call.1} parent=5 // pred_region
        %s147 = ssub.s32 %s13, 1
        // Predicated region
        $region13: #{tpu_custom_call.1} parent=11 // pred_check
          %p148 = pneg %p79
        $region14: #{tpu_custom_call.1} parent=11 // pred_check_branch
          %150 = sbr.rel (%p148) target = $region16
        $region15: #{tpu_custom_call.1} parent=11 // pred_region
          %152 = vsyncadd [#allocation5], 0
          %s153 = smul.addr %s22, 2
          %s154 = scalar_lea.hbm %s1, %s153
          %s155 = sshll.u32 %s154, 4
          %s156 = int_to_ptr.hbm [resolvable:$true] %s155
          %s157 = sshll.u32 [#allocation4], 4
          %s158 = int_to_ptr.vmem [resolvable:$true] %s157
          %163 = dma.hbm_to_vmem [thread:$0]  %s156, 128, %s158, [#allocation5], 32, 32, 2
        $region16: #{tpu_custom_call.1} parent=11 // pred_fallthru
          _
        // Predicated region
        $region17: #{tpu_custom_call.1} parent=11 // pred_check
          %p164 = pneg %p105
        $region18: #{tpu_custom_call.1} parent=11 // pred_check_branch
          %166 = sbr.rel (%p164) target = $region20
        $region19: #{tpu_custom_call.1} parent=11 // pred_region
          %168 = vsyncadd [#allocation5], 0
          %s169 = smul.addr %s22, 2
          %s170 = scalar_lea.hbm %s2, %s169
          %s172 = sshll.u32 %s170, 4
          %s173 = int_to_ptr.hbm [resolvable:$true] %s172
          %s174 = sshll.u32 [#allocation6], 4
          %s175 = int_to_ptr.vmem [resolvable:$true] %s174
          %177 = dma.hbm_to_vmem [thread:$0]  %s173, 32, %s175, [#allocation5]
        $region20: #{tpu_custom_call.1} parent=11 // pred_fallthru
          _
      $region12: #{tpu_custom_call.1} parent=5 // pred_fallthru
        _
      %p178 = scmp.lt.s32.totalorder %s13, 4
      // Predicated region
      $region21: #{tpu_custom_call.1} parent=5 // pred_check
        %p179 = pneg %p178
      $region22: #{tpu_custom_call.1} parent=5 // pred_check_branch
        %181 = sbr.rel (%p179) target = $region24
      $region23: #{tpu_custom_call.1} parent=5 // pred_region
        // Predicated region
        $region25: #{tpu_custom_call.1} parent=23 // pred_check
          %p182 = pneg %p47
        $region26: #{tpu_custom_call.1} parent=23 // pred_check_branch
          %184 = sbr.rel (%p182) target = $region28
        $region27: #{tpu_custom_call.1} parent=23 // pred_region
          %s185 = sand.u32 %s37, 1
          %s186 = scalar_lea.sflag [#allocation3], %s185
          %s187 = sand.u32 %s37, 1
          %s188 = smul.addr %s187, 4
          %s189 = scalar_lea.vmem [#allocation2], %s188
          %191 = vsyncadd %s186, 0
          %s192 = smul.addr %s21, 4
          %s193 = sadd.s32 %s20, %s192
          %s194 = scalar_lea.hbm %s0, %s193
          %s195 = sshll.u32 %s194, 4
          %s196 = int_to_ptr.hbm [resolvable:$true] %s195
          %s197 = sshll.u32 %s189, 4
          %s198 = int_to_ptr.vmem [resolvable:$true] %s197
          %203 = dma.hbm_to_vmem [thread:$0]  %s196, 64, %s198, %s186, 16, 16, 1
        $region28: #{tpu_custom_call.1} parent=23 // pred_fallthru
          _
      $region24: #{tpu_custom_call.1} parent=5 // pred_fallthru
        _
      %p204 = scmp.le.s32.totalorder 1, %s13
      %p205 = scmp.lt.s32.totalorder %s13, 5
      %p206 = pnand %p204, %p205
      %p207 = pneg %p206
      // Predicated region
      $region29: #{tpu_custom_call.1} parent=5 // pred_check
        _
      $region30: #{tpu_custom_call.1} parent=5 // pred_check_branch
        %209 = sbr.rel (%p206) target = $region32
      $region31: #{tpu_custom_call.1} parent=5 // pred_region
        %s210 = ssub.s32 %s13, 1
        %s211 = sand.u32 %s40, 1
        %s212 = scalar_lea.sflag [#allocation3], %s211
        %s213 = sand.u32 %s40, 1
        %s214 = smul.addr %s213, 4
        %s215 = scalar_lea.vmem [#allocation2], %s214
        // Predicated region
        $region33: #{tpu_custom_call.1} parent=31 // pred_check
          %p216 = pneg %p53
        $region34: #{tpu_custom_call.1} parent=31 // pred_check_branch
          %218 = sbr.rel (%p216) target = $region36
        $region35: #{tpu_custom_call.1} parent=31 // pred_region
          %220 = dma.done %s212, 64
        $region36: #{tpu_custom_call.1} parent=31 // pred_fallthru
          _
        // Predicated region
        $region37: #{tpu_custom_call.1} parent=31 // pred_check
          %p221 = pneg %p79
        $region38: #{tpu_custom_call.1} parent=31 // pred_check_branch
          %223 = sbr.rel (%p221) target = $region40
        $region39: #{tpu_custom_call.1} parent=31 // pred_region
          %225 = dma.done [#allocation5], 128
        $region40: #{tpu_custom_call.1} parent=31 // pred_fallthru
          _
        // Predicated region
        $region41: #{tpu_custom_call.1} parent=31 // pred_check
          %p226 = pneg %p105
        $region42: #{tpu_custom_call.1} parent=31 // pred_check_branch
          %228 = sbr.rel (%p226) target = $region44
        $region43: #{tpu_custom_call.1} parent=31 // pred_region
          %230 = dma.done [#allocation5], 32
        $region44: #{tpu_custom_call.1} parent=31 // pred_fallthru
          _
        %s231 = sand.u32 %s40, 1
        %s232 = scalar_lea.sflag [#allocation3], %s231
        %s233 = sand.u32 %s40, 1
        %s234 = smul.addr %s233, 4
        %s235 = scalar_lea.vmem [#allocation2], %s234
        %p236 = pneg %p53
        %p237 = pneg %p50
        %p238 = pneg %p79
        %p239 = pneg %p76
        %p240 = pneg %p105
        %p241 = pneg %p102
        %p242 = pneg %p133
        %p243 = pneg %p130
        %p244 = scmp.lt.s32.totalorder %s22, 0
        %s245 = scalar_select %p244, %s22, 0
        %p246 = scmp.lt.s32.totalorder %s23, 3
        %s247 = scalar_select %p246, %s23, 3
        %s248 = smul.addr %s245, 4
        %s249 = sadd.s32 %s247, %s248
        %s250 = scalar_lea.vmem %s3, %s249
        %p251 = scmp.lt.s32.totalorder %s22, 0
        %s252 = scalar_select %p251, %s22, 0
        %p253 = scmp.lt.s32.totalorder %s23, 3
        %s254 = scalar_select %p253, %s23, 3
        %s255 = smul.addr %s252, 4
        %s256 = sadd.s32 %s254, %s255
        %s257 = scalar_lea.vmem %s3, %s256
        %v258 = vld [vmem:[%s215] sm:$0x1]
        %v259 = vld [vmem:[%s215 + $0x1] sm:$0x1]
        %v260 = vld [vmem:[%s215 + $0x2] sm:$0x1]
        %v261 = vld [vmem:[%s215 + $0x3] sm:$0x1]
        %v262 = vunpack.c.l.bf16 %v258
        %v263 = vunpack.c.l.bf16 %v259
        %v264 = vunpack.c.l.bf16 %v260
        %v265 = vunpack.c.l.bf16 %v261
        %v266 = vxor.u32 %v262, 2147483648
        %v267 = vxor.u32 %v263, 2147483648
        %v268 = vxor.u32 %v264, 2147483648
        %v269 = vxor.u32 %v265, 2147483648
        %v270 = vmul.f32 %v266, 1.442695
        %v271 = vpow.pop %v270
        %v272 = vmul.f32 %v267, 1.442695
        %v273 = vpow.pop %v272
        %v274 = vmul.f32 %v268, 1.442695
        %v275 = vpow.pop %v274
        %v276 = vmul.f32 %v269, 1.442695
        %v277 = vpow.pop %v276
        %v278 = vadd.f32 %v271, 1.0
        %v279 = vadd.f32 %v273, 1.0
        %v280 = vadd.f32 %v275, 1.0
        %v281 = vadd.f32 %v277, 1.0
        %v282 = vrcp.pop %v278
        %v283 = vmul.f32 %v278, %v282
        %v284 = vsub.f32 1.0, %v283
        %v285 = vmul.f32 %v282, %v284
        %v286 = vadd.f32 %v282, %v285
        %vm287 = vweird.f32 %v278
        %vm288 = vweird.f32 %v282
        %vm289 = vmor %vm287, %vm288
        %v290 = vsel %vm289, %v282, %v286
        %v291 = vand.u32 2147483647, %v278
        %vm292 = vcmp.eq.f32.partialorder %v291, 8.507059e+37
        %v293 = vand.u32 %v278, 2147483648
        %v294 = vor.u32 1.1754944e-38, %v293
        %v295 = vsel %vm292, %v294, %v290
        %v296 = vmul.f32 1.0, %v295
        %v297 = vrcp.pop %v279
        %v298 = vmul.f32 %v279, %v297
        %v299 = vsub.f32 1.0, %v298
        %v300 = vmul.f32 %v297, %v299
        %v301 = vadd.f32 %v297, %v300
        %vm302 = vweird.f32 %v279
        %vm303 = vweird.f32 %v297
        %vm304 = vmor %vm302, %vm303
        %v305 = vsel %vm304, %v297, %v301
        %v306 = vand.u32 2147483647, %v279
        %vm307 = vcmp.eq.f32.partialorder %v306, 8.507059e+37
        %v308 = vand.u32 %v279, 2147483648
        %v309 = vor.u32 1.1754944e-38, %v308
        %v310 = vsel %vm307, %v309, %v305
        %v311 = vmul.f32 1.0, %v310
        %v312 = vrcp.pop %v280
        %v313 = vmul.f32 %v280, %v312
        %v314 = vsub.f32 1.0, %v313
        %v315 = vmul.f32 %v312, %v314
        %v316 = vadd.f32 %v312, %v315
        %vm317 = vweird.f32 %v280
        %vm318 = vweird.f32 %v312
        %vm319 = vmor %vm317, %vm318
        %v320 = vsel %vm319, %v312, %v316
        %v321 = vand.u32 2147483647, %v280
        %vm322 = vcmp.eq.f32.partialorder %v321, 8.507059e+37
        %v323 = vand.u32 %v280, 2147483648
        %v324 = vor.u32 1.1754944e-38, %v323
        %v325 = vsel %vm322, %v324, %v320
        %v326 = vmul.f32 1.0, %v325
        %v327 = vrcp.pop %v281
        %v328 = vmul.f32 %v281, %v327
        %v329 = vsub.f32 1.0, %v328
        %v330 = vmul.f32 %v327, %v329
        %v331 = vadd.f32 %v327, %v330
        %vm332 = vweird.f32 %v281
        %vm333 = vweird.f32 %v327
        %vm334 = vmor %vm332, %vm333
        %v335 = vsel %vm334, %v327, %v331
        %v336 = vand.u32 2147483647, %v281
        %vm337 = vcmp.eq.f32.partialorder %v336, 8.507059e+37
        %v338 = vand.u32 %v281, 2147483648
        %v339 = vor.u32 1.1754944e-38, %v338
        %v340 = vsel %vm337, %v339, %v335
        %v341 = vmul.f32 1.0, %v340
        %v342 = vld [vmem:[#allocation4] sm:$0x3]
        %v343 = vld [vmem:[#allocation4 + $0x2] sm:$0x3]
        %v344 = vld [vmem:[#allocation4 + $0x4] sm:$0x3]
        %v345 = vld [vmem:[#allocation4 + $0x6] sm:$0x3]
        %v346 = vmul.f32 %v296, %v342
        %v347 = vmul.f32 %v311, %v343
        %v348 = vmul.f32 %v326, %v344
        %v349 = vmul.f32 %v341, %v345
        %vm350 = vcmask 1041408
        %v351 = vsel %vm350, %v346, 0.0
        %v352 = vsel %vm350, %v347, 0.0
        %v353 = vadd.f32 %v351, %v352
        %v354 = vsel %vm350, %v348, 0.0
        %v355 = vadd.f32 %v353, %v354
        %v356 = vsel %vm350, %v349, 0.0
        %v357 = vadd.f32 %v355, %v356
        %v358 = vmul.f32 %v296, %v296
        %v359 = vmul.f32 %v311, %v311
        %v360 = vmul.f32 %v326, %v326
        %v361 = vmul.f32 %v341, %v341
        %v362 = vsel %vm350, %v358, 0.0
        %v363 = vsel %vm350, %v359, 0.0
        %v364 = vadd.f32 %v362, %v363
        %v365 = vsel %vm350, %v360, 0.0
        %v366 = vadd.f32 %v364, %v365
        %v367 = vsel %vm350, %v361, 0.0
        %v368 = vadd.f32 %v366, %v367
        %v369 = vld [vmem:[#allocation6] sm:$0x3]
        %v370 = vadd.f32 %v368, %v369
        %v371 = vadd.f32 %v370, 1e-06
        %v372 = vmul.f32 %v357, 2.0
        %v373 = vadd.f32 %v372, 1e-06
        %v374 = vrcp.pop %v371
        %v375 = vmul.f32 %v373, %v374
        %v376 = vsel %vm350, %v375, 0.0
        %377 = vadd.xlane.f32.xlu0 %v376
        %v378 = vpop.xlane.xlu0 %377
        %v379 = vrot.slane %v378, 4
        %v380 = vadd.f32 %v378, %v379
        %v381 = vrot.slane %v380, 2
        %v382 = vadd.f32 %v380, %v381
        %v383 = vrot.slane %v382, 1
        %v384 = vadd.f32 %v382, %v383
        %s385 = vtos %v384
        %v386 = vstv %s385
        %vm387 = vcmask 0
        %388 = vst.msk [vmem:[%s257] sm:$0x1] %vm387, %v386
        %p389 = scmp.lt.s32.totalorder %s22, 0
        %s390 = scalar_select %p389, %s22, 0
        %p391 = scmp.lt.s32.totalorder %s23, 3
        %s392 = scalar_select %p391, %s23, 3
        %s393 = smul.addr %s390, 4
        %s394 = sadd.s32 %s392, %s393
        %s395 = scalar_lea.vmem %s3, %s394
        // Predicated region
        $region45: #{tpu_custom_call.1} parent=31 // pred_check
          %p396 = pneg %p130
        $region46: #{tpu_custom_call.1} parent=31 // pred_check_branch
          %398 = sbr.rel (%p396) target = $region48
        $region47: #{tpu_custom_call.1} parent=31 // pred_region
          _
        $region48: #{tpu_custom_call.1} parent=31 // pred_fallthru
          _
      $region32: #{tpu_custom_call.1} parent=5 // pred_fallthru
        _
      %p399 = scmp.le.s32.totalorder 2, %s13
      // Predicated region
      $region49: #{tpu_custom_call.1} parent=5 // pred_check
        %p400 = pneg %p399
      $region50: #{tpu_custom_call.1} parent=5 // pred_check_branch
        %402 = sbr.rel (%p400) target = $region52
      $region51: #{tpu_custom_call.1} parent=5 // pred_region
        %s403 = ssub.s32 %s13, 2
        // Predicated region
        $region53: #{tpu_custom_call.1} parent=51 // pred_check
          %p404 = pneg %p136
        $region54: #{tpu_custom_call.1} parent=51 // pred_check_branch
          %406 = sbr.rel (%p404) target = $region56
        $region55: #{tpu_custom_call.1} parent=51 // pred_region
          %p407 = scmp.lt.s32.totalorder %s24, 0
          %s408 = scalar_select %p407, %s24, 0
          %p409 = scmp.lt.s32.totalorder %s25, 3
          %s410 = scalar_select %p409, %s25, 3
          %s411 = smul.addr %s408, 4
          %s412 = sadd.s32 %s410, %s411
          %s413 = scalar_lea.vmem %s3, %s412
        $region56: #{tpu_custom_call.1} parent=51 // pred_fallthru
          _
      $region52: #{tpu_custom_call.1} parent=5 // pred_fallthru
        _
    $region6: #{tpu_custom_call.1} parent=1 // loop_footer
      %s17 = sadd.s32 1, %s13
    $region7: #{tpu_custom_call.1} parent=1 // loop_footer_branch
      %12 = sbr.rel target = $region3
    $region8: #{tpu_custom_call.1} parent=1 // loop_exit
      _
    %414 = vsyncpa [#allocation3], 1
    %s415 = scalar_lea.sflag [#allocation3], 1
    %416 = vsyncpa %s415, 1
    %417 = vsyncpa [#allocation5], 1

</llo_original>
